<compile_context>
chip_gen: v6e
topology: v6e:2x2x1
jax: 0.10.0
libtpu: 0.0.40
codegen_flags: <defaults>
</compile_context>

<pallas_src>
import jax
import jax.numpy as jnp
from jax.experimental import pallas as pl
from jax.experimental.pallas import tpu as pltpu


def _normalizer_kernel(mean_ref, inv_std_ref, x_ref, out_ref):
    """out = (x - mean_row) * inv_std_row, computed in f32, cast on store.

    x_ref / out_ref        : (TILE_R, TILE_C) lane-dense slab.
    mean_ref / inv_std_ref : (TILE_R, 1) per-row (= per-channel) constants,
                             broadcast across the lane axis by the VPU.
    """
    x = x_ref[...].astype(jnp.float32)
    out_ref[...] = ((x - mean_ref[...]) * inv_std_ref[...]).astype(out_ref.dtype)


def _largest_divisor_multiple(total, base, cap):
    """Largest multiple of `base` that divides `total` and is <= cap, or None."""
    cap = min(cap, total)
    t = (cap // base) * base
    while t >= base:
        if total % t == 0:
            return t
        t -= base
    return None


def _pick_tiles(n_rows, n_cols, elem_bytes, target_bytes=4 << 20):
    """Pick a lane-dense (TILE_R, TILE_C) block of roughly `target_bytes`.

    ~4 MB blocks double-buffer (in + out) comfortably inside v7x's 32 MiB
    scoped-VMEM default (64 MiB physical) while still amortizing the
    ~0.35 us per-grid-step overhead on v5e/v6e/v7x.  TILE_C is always a
    multiple of 128 (or the full row) so stores are unmasked `vst`s; TILE_R
    is a multiple of 8 (or the full extent).
    """
    tile_r = _largest_divisor_multiple(n_rows, 8, 64)
    if tile_r is None:
        tile_r = n_rows            # full extent is always a legal block dim
    cap_c = max(128, target_bytes // (tile_r * elem_bytes))
    tile_c = _largest_divisor_multiple(n_cols, 128, cap_c)
    if tile_c is None:
        tile_c = n_cols            # full extent is always a legal block dim
    return tile_r, tile_c


def pallas_normalizer(imgs_flat, pixel_mean, pixel_std, out_dtype=None):
    """Per-channel (x - mean) / std over a batch of NCHW images.

    imgs_flat : (N, C, H, W) float   (N = batch * n_views)
    pixel_mean: (C,) float
    pixel_std : (C,) float
    returns   : (N, C, H, W) `out_dtype` (defaults to imgs_flat.dtype)
    """
    N, C, H, W = imgs_flat.shape
    out_dtype = imgs_flat.dtype if out_dtype is None else out_dtype

    # Lane-dense 2-D view: one row per (image, channel), H*W contiguous pixels
    # per row.  Reshape of a contiguous array is free.
    R, HW = N * C, H * W
    x2d = imgs_flat.reshape(R, HW)

    # Per-row constants: row n*C + c holds channel c.  Tiny (R, 1) arrays.
    # Note: multiplying by a precomputed reciprocal matches torch's division
    # to within a few ULPs (exact for the default std == 1.0).
    mean_rows = jnp.tile(pixel_mean.astype(jnp.float32), N).reshape(R, 1)
    inv_std_rows = jnp.tile((1.0 / pixel_std).astype(jnp.float32), N).reshape(R, 1)

    elem_bytes = max(jnp.dtype(imgs_flat.dtype).itemsize,
                     jnp.dtype(out_dtype).itemsize)
    tile_r, tile_c = _pick_tiles(R, HW, elem_bytes)
    grid = (R // tile_r, HW // tile_c)

    row_spec = pl.BlockSpec((tile_r, 1), lambda i, j: (i, 0))
    img_spec = pl.BlockSpec((tile_r, tile_c), lambda i, j: (i, j))

    out2d = pl.pallas_call(
        _normalizer_kernel,
        out_shape=jax.ShapeDtypeStruct((R, HW), out_dtype),
        grid_spec=pl.GridSpec(
            grid=grid,
            in_specs=[row_spec, row_spec, img_spec],
            out_specs=img_spec,
        ),
        compiler_params=pltpu.CompilerParams(
            dimension_semantics=("parallel", "parallel"),
        ),
    )(mean_rows, inv_std_rows, x2d)

    return out2d.reshape(N, C, H, W)


def neural_recon_forward(inputs, pixel_mean, pixel_std):
    """Mirror of NeuralRecon.forward for the parts defined in the module.

    inputs['imgs']: (B, V, C, H, W) float
    Returns a dict containing the normalized images (the tensors that would be
    fed to backbone2d), stacked as (B, V, C, H, W).
    """
    imgs = inputs["imgs"]
    B, V, C, H, W = imgs.shape

    # torch.unbind(inputs['imgs'], 1) + per-view normalizer, fused into one
    # Pallas call over all B*V images (a single HBM read + write).  The
    # backbone should consume the stacked (B*V, C, H, W) batch directly rather
    # than V separate per-view slices.
    imgs_flat = imgs.reshape(B * V, C, H, W)
    normed_flat = pallas_normalizer(imgs_flat, pixel_mean, pixel_std)

    outputs = {}
    # TODO(synk): features = self.backbone2d(normed_flat)  — MnasMulti not given in source.
    # TODO(synk): outputs = self.neucon_net(features, inputs, outputs)  — NeuConNet not given.
    # TODO(synk): outputs = self.fuse_to_global(outputs['coords'], outputs['tsdf'], ...)  — GRUFusion not given.
    # TODO(synk): ideally fold (x - mean)/std into backbone2d's first conv weights so this pass disappears.
    outputs["normalized_imgs"] = normed_flat.reshape(B, V, C, H, W)
    return outputs


if __name__ == "__main__":
    key = jax.random.PRNGKey(0)

    # Small shapes consistent with the module: batch=2, n_views=3, RGB, 16x16.
    B, V, C, H, W = 2, 3, 3, 16, 16
    imgs = jax.random.uniform(key, (B, V, C, H, W), dtype=jnp.float32) * 255.0

    # Deterministic cfg.MODEL.PIXEL_MEAN / PIXEL_STD (NeuralRecon defaults).
    pixel_mean = jnp.array([103.53, 116.28, 123.675], dtype=jnp.float32)
    pixel_std = jnp.array([1.0, 1.0, 1.0], dtype=jnp.float32)

    inputs = {"imgs": imgs}
    outputs = neural_recon_forward(inputs, pixel_mean, pixel_std)
    result = jax.block_until_ready(outputs["normalized_imgs"])

    # Pure-JAX reference for the normalizer semantics:
    # (x - pixel_mean.view(-1,1,1)) / pixel_std.view(-1,1,1)
    ref = (imgs - pixel_mean[None, None, :, None, None]) / pixel_std[
        None, None, :, None, None
    ]
    assert result.shape == (B, V, C, H, W)
    assert jnp.allclose(result, ref, atol=1e-5, rtol=1e-5)

    print("KERNEL_OK")
</pallas_src>

<mosaic_0001>
module attributes {stable_mosaic.version = 11 : i64} {
  func.func @_normalizer_kernel(%arg0: i32, %arg1: i32, %arg2: memref<18x1xf32, #tpu.memory_space<vmem>>, %arg3: memref<18x1xf32, #tpu.memory_space<vmem>>, %arg4: memref<18x256xf32, #tpu.memory_space<vmem>>, %arg5: memref<18x256xf32, #tpu.memory_space<vmem>>) attributes {dimension_semantics = [#tpu.dimension_semantics<parallel>, #tpu.dimension_semantics<parallel>], iteration_bounds = array<i64: 1, 1>, scalar_prefetch = 0 : i64, scratch_operands = 0 : i64, tpu.core_type = #tpu.core_type<tc>, window_params = [{transform_indices = @transform_0, window_bounds = array<i64: 18, 1>}, {transform_indices = @transform_1, window_bounds = array<i64: 18, 1>}, {transform_indices = @transform_2, window_bounds = array<i64: 18, 256>}, {transform_indices = @transform_3, window_bounds = array<i64: 18, 256>}]} {
    %c0 = arith.constant 0 : index
    %c0_0 = arith.constant 0 : index
    %0 = vector.load %arg4[%c0, %c0_0] : memref<18x256xf32, #tpu.memory_space<vmem>>, vector<18x256xf32>
    %c0_1 = arith.constant 0 : index
    %c0_2 = arith.constant 0 : index
    %1 = vector.load %arg2[%c0_1, %c0_2] : memref<18x1xf32, #tpu.memory_space<vmem>>, vector<18x1xf32>
    %2 = vector.broadcast %1 : vector<18x1xf32> to vector<18x256xf32>
    %3 = arith.subf %0, %2 : vector<18x256xf32>
    %c0_3 = arith.constant 0 : index
    %c0_4 = arith.constant 0 : index
    %4 = vector.load %arg3[%c0_3, %c0_4] : memref<18x1xf32, #tpu.memory_space<vmem>>, vector<18x1xf32>
    %5 = vector.broadcast %4 : vector<18x1xf32> to vector<18x256xf32>
    %6 = arith.mulf %3, %5 : vector<18x256xf32>
    %c0_5 = arith.constant 0 : index
    %c0_6 = arith.constant 0 : index
    %7 = vector.load %arg5[%c0_5, %c0_6] : memref<18x256xf32, #tpu.memory_space<vmem>>, vector<18x256xf32>
    tpu.vector_store %arg5[%c0_5, %c0_6], %6 {strides = array<i32>} : memref<18x256xf32, #tpu.memory_space<vmem>>, vector<18x256xf32>,
    return
  }
  func.func @transform_0(%arg0: i32, %arg1: i32) -> (i32, i32) {
    %c0_i32 = arith.constant 0 : i32
    %c0_i32_0 = arith.constant 0 : i32
    return %arg0, %c0_i32 : i32, i32
  }
  func.func @transform_1(%arg0: i32, %arg1: i32) -> (i32, i32) {
    %c0_i32 = arith.constant 0 : i32
    %c0_i32_0 = arith.constant 0 : i32
    return %arg0, %c0_i32 : i32, i32
  }
  func.func @transform_2(%arg0: i32, %arg1: i32) -> (i32, i32) {
    %c0_i32 = arith.constant 0 : i32
    return %arg0, %arg1 : i32, i32
  }
  func.func @transform_3(%arg0: i32, %arg1: i32) -> (i32, i32) {
    %c0_i32 = arith.constant 0 : i32
    return %arg0, %arg1 : i32, i32
  }
}

</mosaic_0001>

<llo_original>
// kernel: tpu_custom_call.1
$region0: #{tpu_custom_call.1}
  #allocation0 [shape = 'u32[]', space=smem, size = 0x4, offset = 0x4, fixed_abs, tag = 'smem constant byte address 0x4 - core index']
  #allocation1 [shape = 'u32[144,128]{1,0:T(1,128)}', space=vmem, size = 0x12000, scoped, tag = 'internal scratch']
  %s0 = inlined_call_operand.vmem [shape: f32[18,1], index: 0, kind: input, shape index: {}]
  %s1 = inlined_call_operand.vmem [shape: f32[18,1], index: 1, kind: input, shape index: {}]
  %s2 = inlined_call_operand.vmem [shape: f32[18,256], index: 2, kind: input, shape index: {}]
  %s3 = inlined_call_operand.hbm [shape: f32[18,256], index: 3, kind: output, shape index: {}]
  %s4 = sld [smem:[#allocation0]]
  $region22: #{tpu_custom_call.1} parent=0
    _
  %s6 = ssub.s32 1, %s4
  %s7 = scalar_select 0, %s6, %s4
  $region1: #{tpu_custom_call.1} parent=0
    #allocation2 [shape = 'u8[24576]{0}', space=vmem, size = 0x6000, scoped, tag = 'output window, operand 0, single buffered']
    #allocation3 [shape = 's32[1]{0}', space=sflag, size = 0x4, scoped, tag = 'scoped memory for tpu_custom_call.1']
    %8 = vsyncpa [#allocation3], 0
    // Predicated region
    $region2: #{tpu_custom_call.1} parent=1 // pred_check
      _
    $region3: #{tpu_custom_call.1} parent=1 // pred_check_branch
      %10 = sbr.rel (0) target = $region5
    $region4: #{tpu_custom_call.1} parent=1 // pred_region
      _
    $region5: #{tpu_custom_call.1} parent=1 // pred_fallthru
      _
    // Predicated region
    $region6: #{tpu_custom_call.1} parent=1 // pred_check
      _
    $region7: #{tpu_custom_call.1} parent=1 // pred_check_branch
      %12 = sbr.rel (0) target = $region9
    $region8: #{tpu_custom_call.1} parent=1 // pred_region
      _
    $region9: #{tpu_custom_call.1} parent=1 // pred_fallthru
      _
    // Predicated region
    $region10: #{tpu_custom_call.1} parent=1 // pred_check
      _
    $region11: #{tpu_custom_call.1} parent=1 // pred_check_branch
      %14 = sbr.rel (0) target = $region13
    $region12: #{tpu_custom_call.1} parent=1 // pred_region
      _
    $region13: #{tpu_custom_call.1} parent=1 // pred_fallthru
      _
    %v15 = vld [vmem:[%s2] sm:$0xff]
    %v16 = vld [vmem:[%s2 + $0x8] sm:$0xff]
    %v17 = vld [vmem:[%s2 + $0x10] sm:$0xff]
    %v18 = vld [vmem:[%s2 + $0x18] sm:$0xff]
    %v19 = vld [vmem:[%s2 + $0x20] sm:$0x3]
    %v20 = vld [vmem:[%s2 + $0x28] sm:$0x3]
    %v21 = vld [vmem:[%s0] sm:$0xff]
    %v22 = vld [vmem:[%s0 + $0x8] sm:$0xff]
    %v23 = vld [vmem:[%s0 + $0x10] sm:$0x3]
    %25 = vset.pattern.permute.xlu0 0
    %26 = vperm.xlu0 %25, %v21
    %v27 = vpop.permute.xlu0 %26
    %30 = vset.pattern.permute.xlu0 0
    %31 = vperm.xlu0 %30, %v22
    %v32 = vpop.permute.xlu0 %31
    %35 = vset.pattern.permute.xlu0 0
    %36 = vperm.xlu0 %35, %v23
    %v37 = vpop.permute.xlu0 %36
    %v39 = vsub.f32 %v15, %v27
    %v40 = vsub.f32 %v16, %v27
    %v41 = vsub.f32 %v17, %v32
    %v42 = vsub.f32 %v18, %v32
    %v43 = vsub.f32 %v19, %v37
    %v44 = vsub.f32 %v20, %v37
    %v45 = vld [vmem:[%s1] sm:$0xff]
    %v46 = vld [vmem:[%s1 + $0x8] sm:$0xff]
    %v47 = vld [vmem:[%s1 + $0x10] sm:$0x3]
    %49 = vset.pattern.permute.xlu0 0
    %50 = vperm.xlu0 %49, %v45
    %v51 = vpop.permute.xlu0 %50
    %54 = vset.pattern.permute.xlu0 0
    %55 = vperm.xlu0 %54, %v46
    %v56 = vpop.permute.xlu0 %55
    %59 = vset.pattern.permute.xlu0 0
    %60 = vperm.xlu0 %59, %v47
    %v61 = vpop.permute.xlu0 %60
    %v63 = vmul.f32 %v39, %v51
    %v64 = vmul.f32 %v40, %v51
    %v65 = vmul.f32 %v41, %v56
    %v66 = vmul.f32 %v42, %v56
    %v67 = vmul.f32 %v43, %v61
    %v68 = vmul.f32 %v44, %v61
    %69 = vst [vmem:[#allocation2] sm:$0xff] %v63
    %70 = vst [vmem:[#allocation2 + $0x8] sm:$0xff] %v64
    %71 = vst [vmem:[#allocation2 + $0x10] sm:$0xff] %v65
    %72 = vst [vmem:[#allocation2 + $0x18] sm:$0xff] %v66
    %73 = vst [vmem:[#allocation2 + $0x20] sm:$0x3] %v67
    %74 = vst [vmem:[#allocation2 + $0x28] sm:$0x3] %v68
    // Predicated region
    $region14: #{tpu_custom_call.1} parent=1 // pred_check
      _
    $region15: #{tpu_custom_call.1} parent=1 // pred_check_branch
      %76 = sbr.rel (0) target = $region17
    $region16: #{tpu_custom_call.1} parent=1 // pred_region
      %s78 = ssub.s32 768, 768
      %79 = vsyncadd [#allocation3], %s78
      %s80 = sshll.u32 [#allocation2], 4
      %s81 = int_to_ptr.vmem [resolvable:$true] %s80
      %86 = dma.vmem_to_hbm [thread:$0]  %s81, 768, %s3, [#allocation3], 256, 256, 16
    $region17: #{tpu_custom_call.1} parent=1 // pred_fallthru
      _
    // Predicated region
    $region18: #{tpu_custom_call.1} parent=1 // pred_check
      _
    $region19: #{tpu_custom_call.1} parent=1 // pred_check_branch
      %88 = sbr.rel (0) target = $region21
    $region20: #{tpu_custom_call.1} parent=1 // pred_region
      %89 = dma.done [#allocation3], 768
    $region21: #{tpu_custom_call.1} parent=1 // pred_fallthru
      _
    %90 = vsyncpa [#allocation3], 1

</llo_original>
